<compile_context>
chip_gen: v5e
topology: v5e:2x2
jax: 0.10.0
libtpu: 0.0.40
codegen_flags: <defaults>
</compile_context>

<pallas_src>
import jax
import jax.numpy as jnp
import numpy as np
from jax.experimental import pallas as pl
from jax.experimental.pallas import tpu as pltpu

# --- module constants (from GeneratingData.__init__) -------------------------
EX_VALUES = (1, 0, -1, 0, 1, -1, -1, 1, 0)
EY_VALUES = (0, 1, 0, -1, 1, 1, -1, -1, 0)
QN = 9


def _gen_kernel(alpha_ref, basis_ref, out_ref):
    """alpha_ref: (Bs, 4, Tl); basis_ref: (3, Qn, 1); out_ref: (Bs, Qn, Tl)."""
    # Sliced ref views: avoids materializing the padded (Bs, 8, Tl) block.
    a00 = alpha_ref[:, 0:1, :]
    a10 = alpha_ref[:, 1:2, :]
    a01 = alpha_ref[:, 2:3, :]
    a11 = alpha_ref[:, 3:4, :]
    ex_b = basis_ref[0:1]    # (1, Qn, 1)
    ey_b = basis_ref[1:2]
    exy_b = basis_ref[2:3]
    exponent = a00 + a10 * ex_b + a01 * ey_b + a11 * exy_b   # (Bs, Qn, Tl)
    # Single lane-dense slab store per grid step.
    out_ref[...] = jnp.exp(exponent).astype(out_ref.dtype)


def _vmem_budget_bytes():
    """Double-buffered working-set budget, adapted to the chip's VMEM."""
    try:
        cap = int(pltpu.get_tpu_info().vmem_capacity_bytes)
    except Exception:
        cap = 64 * 1024 * 1024  # conservative: v7x per-TensorCore VMEM
    # Keep ~half of physical VMEM for the blocks (double-buffered), capped so
    # v5e/v6e (128 MiB) target ~56 MiB and v7x (64 MiB/TC) targets 32 MiB.
    return min(cap // 2, 56 * 1024 * 1024)


def _choose_tiling(samples, YX, Qn):
    """Pick (Bs, Tl) so the padded, double-buffered footprint fits the budget."""
    in_pad = 8                      # alpha block: 4 sublanes pad to 8
    out_pad = ((Qn + 7) // 8) * 8   # Qn=9 sublanes pad to 16
    budget = _vmem_budget_bytes()
    per_sample_full = (in_pad + out_pad) * YX * 4   # f32, full lane extent
    bs_cap = budget // (2 * per_sample_full)
    if bs_cap >= 1:
        Tl = YX
        # >=2 grid steps when samples > 1 so v7x's two TCs both get work.
        Bs = int(max(1, min(bs_cap, pl.cdiv(samples, 2))))
    else:
        # One sample doesn't fit -> also block the (lane) spatial axis.
        Bs = 1
        tl_cap = budget // (2 * (in_pad + out_pad) * 4)
        Tl = int(min(YX, max(128, (tl_cap // 128) * 128)))
        # TODO(synk): if YX is not a multiple of 128 on this path the last
        # lane block uses masked stores; pad Y*X in the wrapper if it is hot.
    return Bs, Tl, in_pad, out_pad


def generating_data_forward(samples, key, *, Uax, Uay, Qn, X, Y,
                            out_dtype=jnp.float32):
    """JAX/Pallas equivalent of GeneratingData(device, Uax, Uay, Qn, X, Y).forward(samples)."""
    assert Qn == QN == len(EX_VALUES)
    YX = Y * X  # flattened (Y, X) -> lane axis; lane-dense when YX % 128 == 0

    # 4 iid uniform alpha fields in [-0.1, 0.1), stacked: (samples, 4, Y*X).
    alphas = jax.random.uniform(key, (samples, 4, YX), dtype=jnp.float32) * 0.2 - 0.1
    # TODO(synk): fuse the uniform RNG into the kernel (pltpu.prng_seed +
    # pltpu.prng_random_bits) to drop the alpha HBM round-trip; kept in plain
    # JAX so the exact alphas match jax.random.uniform and can be returned.

    # Basis vectors (Uax/Uay are Python floats) packed as a small kernel input
    # instead of closure-captured array constants (which Pallas rejects).
    ex = np.asarray(EX_VALUES, np.float32) + np.float32(Uax)
    ey = np.asarray(EY_VALUES, np.float32) + np.float32(Uay)
    exy = ex + ey
    basis = jnp.asarray(np.stack([ex, ey, exy]).reshape(3, Qn, 1))

    Bs, Tl, in_pad, out_pad = _choose_tiling(samples, YX, Qn)
    grid = (pl.cdiv(samples, Bs), pl.cdiv(YX, Tl))

    # Padding-aware VMEM limit: double-buffered blocks + basis + margin.
    block_bytes = Bs * (in_pad + out_pad) * Tl * 4
    basis_bytes = 3 * out_pad * 128 * 4
    vmem_limit = int(min(2 * block_bytes + 2 * basis_bytes + 8 * 1024 * 1024,
                         96 * 1024 * 1024))

    cost = pl.CostEstimate(
        flops=6 * samples * Qn * YX,
        transcendentals=samples * Qn * YX,
        bytes_accessed=(4 * samples * YX + samples * Qn * YX) * 4,
    )

    f_flat = pl.pallas_call(
        _gen_kernel,
        out_shape=jax.ShapeDtypeStruct((samples, Qn, YX), out_dtype),
        grid=grid,
        in_specs=[
            # Last-two dims equal the full array dims (or a 128-multiple
            # lane chunk) -> layout-legal, lane-dense loads.
            pl.BlockSpec((Bs, 4, Tl), lambda b, l: (b, 0, l)),
            pl.BlockSpec((3, Qn, 1), lambda b, l: (0, 0, 0)),
        ],
        out_specs=pl.BlockSpec((Bs, Qn, Tl), lambda b, l: (b, 0, l)),
        compiler_params=pltpu.CompilerParams(
            dimension_semantics=("parallel", "parallel"),
            vmem_limit_bytes=vmem_limit,
        ),
        cost_estimate=cost,
    )(alphas, basis)

    # Reshape back to the module's (samples, Qn, Y, X) layout (pure plumbing).
    f = f_flat.reshape(samples, Qn, Y, X)
    aux = (alphas.reshape(samples, 4, Y, X),
           jnp.asarray(ex), jnp.asarray(ey), jnp.asarray(exy))
    return f, aux


if __name__ == "__main__":
    # Small shapes consistent with the module: 2 samples, Qn=9 lattice
    # directions, a 16x16 (Y, X) grid.
    samples, Y, X = 2, 16, 16
    Uax, Uay = 0.05, -0.02

    key = jax.random.PRNGKey(0)
    f, (alphas, ex, ey, exy) = generating_data_forward(
        samples, key, Uax=Uax, Uay=Uay, Qn=QN, X=X, Y=Y)
    f = jax.block_until_ready(f)

    # Reference check against the plain-JAX broadcast implementation.
    a00 = alphas[:, 0][:, None, :, :]
    a10 = alphas[:, 1][:, None, :, :]
    a01 = alphas[:, 2][:, None, :, :]
    a11 = alphas[:, 3][:, None, :, :]
    ref = jnp.exp(a00
                  + a10 * ex[None, :, None, None]
                  + a01 * ey[None, :, None, None]
                  + a11 * exy[None, :, None, None])
    assert f.shape == (samples, QN, Y, X)
    assert jnp.allclose(f, ref, rtol=1e-5, atol=1e-5)
    print("KERNEL_OK")
</pallas_src>

<mosaic_0001>
module attributes {stable_mosaic.version = 11 : i64} {
  func.func @_gen_kernel(%arg0: i32, %arg1: i32, %arg2: memref<1x4x256xf32, #tpu.memory_space<vmem>>, %arg3: memref<3x9x1xf32, #tpu.memory_space<vmem>>, %arg4: memref<1x9x256xf32, #tpu.memory_space<vmem>>) attributes {dimension_semantics = [#tpu.dimension_semantics<parallel>, #tpu.dimension_semantics<parallel>], iteration_bounds = array<i64: 2, 1>, scalar_prefetch = 0 : i64, scratch_operands = 0 : i64, tpu.core_type = #tpu.core_type<tc>, window_params = [{transform_indices = @transform_0, window_bounds = array<i64: 1, 4, 256>}, {pipeline_mode = #tpu.pipeline_mode<synchronous>, transform_indices = @transform_1, window_bounds = array<i64: 3, 9, 1>}, {transform_indices = @transform_2, window_bounds = array<i64: 1, 9, 256>}]} {
    %c0 = arith.constant 0 : index
    %c0_0 = arith.constant 0 : index
    %c0_1 = arith.constant 0 : index
    %0 = vector.load %arg2[%c0, %c0_0, %c0_1] : memref<1x4x256xf32, #tpu.memory_space<vmem>>, vector<1x1x256xf32>
    %c0_2 = arith.constant 0 : index
    %c1 = arith.constant 1 : index
    %c0_3 = arith.constant 0 : index
    %1 = vector.load %arg2[%c0_2, %c1, %c0_3] : memref<1x4x256xf32, #tpu.memory_space<vmem>>, vector<1x1x256xf32>
    %c0_4 = arith.constant 0 : index
    %c2 = arith.constant 2 : index
    %c0_5 = arith.constant 0 : index
    %2 = vector.load %arg2[%c0_4, %c2, %c0_5] : memref<1x4x256xf32, #tpu.memory_space<vmem>>, vector<1x1x256xf32>
    %c0_6 = arith.constant 0 : index
    %c3 = arith.constant 3 : index
    %c0_7 = arith.constant 0 : index
    %3 = vector.load %arg2[%c0_6, %c3, %c0_7] : memref<1x4x256xf32, #tpu.memory_space<vmem>>, vector<1x1x256xf32>
    %c0_8 = arith.constant 0 : index
    %c0_9 = arith.constant 0 : index
    %c0_10 = arith.constant 0 : index
    %4 = vector.load %arg3[%c0_8, %c0_9, %c0_10] : memref<3x9x1xf32, #tpu.memory_space<vmem>>, vector<1x9x1xf32>
    %c1_11 = arith.constant 1 : index
    %c0_12 = arith.constant 0 : index
    %c0_13 = arith.constant 0 : index
    %5 = vector.load %arg3[%c1_11, %c0_12, %c0_13] : memref<3x9x1xf32, #tpu.memory_space<vmem>>, vector<1x9x1xf32>
    %c2_14 = arith.constant 2 : index
    %c0_15 = arith.constant 0 : index
    %c0_16 = arith.constant 0 : index
    %6 = vector.load %arg3[%c2_14, %c0_15, %c0_16] : memref<3x9x1xf32, #tpu.memory_space<vmem>>, vector<1x9x1xf32>
    %7 = vector.broadcast %1 : vector<1x1x256xf32> to vector<1x9x256xf32>
    %8 = vector.broadcast %4 : vector<1x9x1xf32> to vector<1x9x256xf32>
    %9 = arith.mulf %7, %8 : vector<1x9x256xf32>
    %10 = vector.broadcast %0 : vector<1x1x256xf32> to vector<1x9x256xf32>
    %11 = arith.addf %10, %9 : vector<1x9x256xf32>
    %12 = vector.broadcast %2 : vector<1x1x256xf32> to vector<1x9x256xf32>
    %13 = vector.broadcast %5 : vector<1x9x1xf32> to vector<1x9x256xf32>
    %14 = arith.mulf %12, %13 : vector<1x9x256xf32>
    %15 = arith.addf %11, %14 : vector<1x9x256xf32>
    %16 = vector.broadcast %3 : vector<1x1x256xf32> to vector<1x9x256xf32>
    %17 = vector.broadcast %6 : vector<1x9x1xf32> to vector<1x9x256xf32>
    %18 = arith.mulf %16, %17 : vector<1x9x256xf32>
    %19 = arith.addf %15, %18 : vector<1x9x256xf32>
    %20 = math.exp %19 : vector<1x9x256xf32>
    %c0_17 = arith.constant 0 : index
    %c0_18 = arith.constant 0 : index
    %c0_19 = arith.constant 0 : index
    %21 = vector.load %arg4[%c0_17, %c0_18, %c0_19] : memref<1x9x256xf32, #tpu.memory_space<vmem>>, vector<1x9x256xf32>
    tpu.vector_store %arg4[%c0_17, %c0_18, %c0_19], %20 {strides = array<i32>} : memref<1x9x256xf32, #tpu.memory_space<vmem>>, vector<1x9x256xf32>,
    return
  }
  func.func @transform_0(%arg0: i32, %arg1: i32) -> (i32, i32, i32) {
    %c0_i32 = arith.constant 0 : i32
    %c0_i32_0 = arith.constant 0 : i32
    return %arg0, %c0_i32, %arg1 : i32, i32, i32
  }
  func.func @transform_1(%arg0: i32, %arg1: i32) -> (i32, i32, i32) {
    %c0_i32 = arith.constant 0 : i32
    %c0_i32_0 = arith.constant 0 : i32
    %c0_i32_1 = arith.constant 0 : i32
    %c0_i32_2 = arith.constant 0 : i32
    return %c0_i32, %c0_i32_0, %c0_i32_1 : i32, i32, i32
  }
  func.func @transform_2(%arg0: i32, %arg1: i32) -> (i32, i32, i32) {
    %c0_i32 = arith.constant 0 : i32
    %c0_i32_0 = arith.constant 0 : i32
    return %arg0, %c0_i32, %arg1 : i32, i32, i32
  }
}

</mosaic_0001>

<llo_original>
// kernel: tpu_custom_call.1
$region0: #{tpu_custom_call.1}
  #allocation0 [shape = 'u32[]', space=smem, size = 0x4, offset = 0x4, fixed_abs, tag = 'smem constant byte address 0x4 - core index']
  #allocation1 [shape = 'u32[72,128]{1,0:T(1,128)}', space=vmem, size = 0x9000, scoped, tag = 'internal scratch']
  %s0 = inlined_call_operand.vmem [shape: f32[2,4,256], index: 0, kind: input, shape index: {}]
  %s1 = inlined_call_operand.vmem [shape: f32[3,9,1], index: 1, kind: input, shape index: {}]
  %s2 = inlined_call_operand.vmem [shape: f32[2,9,256], index: 2, kind: output, shape index: {}]
  %s3 = sld [smem:[#allocation0]]
  $region41: #{tpu_custom_call.1} parent=0
    _
  %s5 = ssub.s32 1, %s3
  %s6 = scalar_select 0, %s5, %s3
  loop: start=0, step=1, limit=4
  $region2: #{tpu_custom_call.1} parent=0 // loop_pre_header
    _
  $region3: #{tpu_custom_call.1} parent=0 // loop_header
    %s8 = sphi 0, %s12
    %p9 = scmp.ge.s32.totalorder %s8, 4
    %s15 = sphi 0, %s27
    %s16 = sphi 0, %s23
    %s17 = sphi 0, %s15
    %s18 = sphi 0, %s16
    %s19 = sphi 0, %s17
    %s20 = sphi 0, %s18
    %s32 = sphi 0, %s34
    %s35 = sphi 0, %s32
    %s36 = sphi 0, %s35
    %s52 = sphi 0, %s36
    %s56 = sphi 0, %s56
    %s58 = sphi 0, %s56
    %s59 = sphi 0, %s58
    %s73 = sphi 0, %s59
    %s81 = sphi 0, %s83
    %s84 = sphi 0, %s81
    %s85 = sphi 0, %s84
    %s101 = sphi 0, %s85
  $region4: #{tpu_custom_call.1} parent=0 // loop_header_branch
    %11 = sbr.rel (%p9) target = $region8
  $region5: #{tpu_custom_call.1} parent=0 // loop_body
    %s13 = ssub.s32 %s8, 1
    %s14 = ssub.s32 %s8, 2
    %s21 = sadd.s32 1, %s16
    %p22 = scmp.ge.s32.totalorder %s21, 1
    %s23 = scalar_select %p22, 0, %s21
    %s24 = sadd.s32 1, %s15
    %s25 = scalar_select %p22, %s24, %s15
    %p26 = scmp.ge.s32.totalorder %s25, 2
    %s27 = scalar_select %p26, 0, %s25
    %s28 = ssub.s32 %s15, %s27
    %s29 = ssub.s32 %s16, %s23
    %s30 = sor.u32 %s28, %s29
    %p31 = scmp.eq.s32.totalorder %s30, 0
    %s33 = sadd.s32 %s32, 1
    %s34 = scalar_select %p31, %s32, %s33
    %p37 = pneg %p31
    %p38 = scmp.eq.s32.totalorder %s8, 1
    %p39 = por %p37, %p38
    %p40 = scmp.ne.s32.totalorder %s32, %s35
    %p41 = scmp.eq.s32.totalorder %s8, 0
    %p42 = por %p40, %p41
    %p43 = scmp.ne.s32.totalorder %s32, %s35
    %p44 = scmp.eq.s32.totalorder %s13, 1
    %p45 = por %p43, %p44
    %p46 = scmp.ne.s32.totalorder %s35, %s36
    %p47 = scmp.eq.s32.totalorder %s13, 0
    %p48 = por %p46, %p47
    %p49 = scmp.ne.s32.totalorder %s35, %s36
    %p50 = scmp.eq.s32.totalorder %s14, 1
    %p51 = por %p49, %p50
    %p53 = scmp.ne.s32.totalorder %s36, %s52
    %p54 = scmp.eq.s32.totalorder %s14, 0
    %p55 = por %p53, %p54
    %s57 = sadd.s32 %s56, 1
    %p60 = scmp.eq.s32.totalorder %s8, 1
    %p61 = scmp.ne.s32.totalorder %s56, %s58
    %p62 = scmp.eq.s32.totalorder %s8, 0
    %p63 = por %p61, %p62
    %p64 = scmp.ne.s32.totalorder %s56, %s58
    %p65 = scmp.eq.s32.totalorder %s13, 1
    %p66 = por %p64, %p65
    %p67 = scmp.ne.s32.totalorder %s58, %s59
    %p68 = scmp.eq.s32.totalorder %s13, 0
    %p69 = por %p67, %p68
    %p70 = scmp.ne.s32.totalorder %s58, %s59
    %p71 = scmp.eq.s32.totalorder %s14, 1
    %p72 = por %p70, %p71
    %p74 = scmp.ne.s32.totalorder %s59, %s73
    %p75 = scmp.eq.s32.totalorder %s14, 0
    %p76 = por %p74, %p75
    %s77 = ssub.s32 %s15, %s27
    %s78 = ssub.s32 %s16, %s23
    %s79 = sor.u32 %s77, %s78
    %p80 = scmp.eq.s32.totalorder %s79, 0
    %s82 = sadd.s32 %s81, 1
    %s83 = scalar_select %p80, %s81, %s82
    %p86 = pneg %p80
    %p87 = scmp.eq.s32.totalorder %s8, 1
    %p88 = por %p86, %p87
    %p89 = scmp.ne.s32.totalorder %s81, %s84
    %p90 = scmp.eq.s32.totalorder %s8, 0
    %p91 = por %p89, %p90
    %p92 = scmp.ne.s32.totalorder %s81, %s84
    %p93 = scmp.eq.s32.totalorder %s13, 1
    %p94 = por %p92, %p93
    %p95 = scmp.ne.s32.totalorder %s84, %s85
    %p96 = scmp.eq.s32.totalorder %s13, 0
    %p97 = por %p95, %p96
    %p98 = scmp.ne.s32.totalorder %s84, %s85
    %p99 = scmp.eq.s32.totalorder %s14, 1
    %p100 = por %p98, %p99
    %p102 = scmp.ne.s32.totalorder %s85, %s101
    %p103 = scmp.eq.s32.totalorder %s14, 0
    %p104 = por %p102, %p103
    %p105 = scmp.le.s32.totalorder 1, %s8
    %p106 = scmp.lt.s32.totalorder %s8, 3
    %p107 = pnand %p105, %p106
    %p108 = pneg %p107
    // Predicated region
    $region9: #{tpu_custom_call.1} parent=5 // pred_check
      _
    $region10: #{tpu_custom_call.1} parent=5 // pred_check_branch
      %110 = sbr.rel (%p107) target = $region12
    $region11: #{tpu_custom_call.1} parent=5 // pred_region
      %s111 = ssub.s32 %s8, 1
      // Predicated region
      $region13: #{tpu_custom_call.1} parent=11 // pred_check
        %p112 = pneg %p69
      $region14: #{tpu_custom_call.1} parent=11 // pred_check_branch
        %114 = sbr.rel (%p112) target = $region16
      $region15: #{tpu_custom_call.1} parent=11 // pred_region
        _
      $region16: #{tpu_custom_call.1} parent=11 // pred_fallthru
        _
    $region12: #{tpu_custom_call.1} parent=5 // pred_fallthru
      _
    %p115 = scmp.lt.s32.totalorder %s8, 2
    // Predicated region
    $region17: #{tpu_custom_call.1} parent=5 // pred_check
      %p116 = pneg %p115
    $region18: #{tpu_custom_call.1} parent=5 // pred_check_branch
      %118 = sbr.rel (%p116) target = $region20
    $region19: #{tpu_custom_call.1} parent=5 // pred_region
      // Predicated region
      $region21: #{tpu_custom_call.1} parent=19 // pred_check
        %p119 = pneg %p42
      $region22: #{tpu_custom_call.1} parent=19 // pred_check_branch
        %121 = sbr.rel (%p119) target = $region24
      $region23: #{tpu_custom_call.1} parent=19 // pred_region
        %s122 = smul.u32 2, %s16
        %p123 = scmp.lt.s32.totalorder %s15, 1
        %s124 = scalar_select %p123, %s15, 1
        %p125 = scmp.lt.s32.totalorder %s122, 1
        %s126 = scalar_select %p125, %s122, 1
        %s127 = smul.addr %s124, 2
        %s128 = sadd.s32 %s126, %s127
        %s129 = smul.addr %s128, 4
        %s130 = scalar_lea.vmem %s0, %s129
        %s131 = smul.u32 2, %s16
      $region24: #{tpu_custom_call.1} parent=19 // pred_fallthru
        _
    $region20: #{tpu_custom_call.1} parent=5 // pred_fallthru
      _
    %p132 = scmp.le.s32.totalorder 1, %s8
    %p133 = scmp.lt.s32.totalorder %s8, 3
    %p134 = pnand %p132, %p133
    %p135 = pneg %p134
    // Predicated region
    $region25: #{tpu_custom_call.1} parent=5 // pred_check
      _
    $region26: #{tpu_custom_call.1} parent=5 // pred_check_branch
      %137 = sbr.rel (%p134) target = $region28
    $region27: #{tpu_custom_call.1} parent=5 // pred_region
      %s138 = ssub.s32 %s8, 1
      %s139 = smul.u32 2, %s18
      %p140 = scmp.lt.s32.totalorder %s17, 1
      %s141 = scalar_select %p140, %s17, 1
      %p142 = scmp.lt.s32.totalorder %s139, 1
      %s143 = scalar_select %p142, %s139, 1
      %s144 = smul.addr %s141, 2
      %s145 = sadd.s32 %s143, %s144
      %s146 = smul.addr %s145, 4
      %s147 = scalar_lea.vmem %s0, %s146
      %p148 = pneg %p48
      %p149 = pneg %p45
      %p150 = pneg %p69
      %p151 = pneg %p66
      %p152 = pneg %p97
      %p153 = pneg %p94
      %s154 = smul.u32 2, %s18
      %p155 = scmp.lt.s32.totalorder %s17, 1
      %s156 = scalar_select %p155, %s17, 1
      %p157 = scmp.lt.s32.totalorder %s154, 1
      %s158 = scalar_select %p157, %s154, 1
      %s159 = smul.addr %s156, 4
      %s160 = sadd.s32 %s158, %s159
      %s161 = smul.addr %s160, 8
      %s162 = scalar_lea.vmem %s2, %s161
      %s163 = smul.u32 2, %s18
      %p164 = scmp.lt.s32.totalorder %s17, 1
      %s165 = scalar_select %p164, %s17, 1
      %p166 = scmp.lt.s32.totalorder %s163, 1
      %s167 = scalar_select %p166, %s163, 1
      %s168 = smul.addr %s165, 2
      %s169 = sadd.s32 %s167, %s168
      %s170 = smul.addr %s169, 4
      %s171 = scalar_lea.vmem %s0, %s170
      %s172 = smul.u32 2, %s18
      %s173 = smul.u32 2, %s18
      %p174 = scmp.lt.s32.totalorder %s17, 1
      %s175 = scalar_select %p174, %s17, 1
      %p176 = scmp.lt.s32.totalorder %s173, 1
      %s177 = scalar_select %p176, %s173, 1
      %s178 = smul.addr %s175, 4
      %s179 = sadd.s32 %s177, %s178
      %s180 = smul.addr %s179, 8
      %s181 = scalar_lea.vmem %s2, %s180
      %s182 = smul.u32 2, %s18
      %v183 = vld [vmem:[%s171] ss:$4 sm:$0x3]
      %s184 = scalar_lea.vmem %s171, 1
      %v185 = vld [vmem:[%s184] ss:$4 sm:$0x3]
      %s186 = scalar_lea.vmem %s171, 2
      %v187 = vld [vmem:[%s186] ss:$4 sm:$0x3]
      %s188 = scalar_lea.vmem %s171, 3
      %v189 = vld [vmem:[%s188] ss:$4 sm:$0x3]
      %v190 = vld [vmem:[%s1] sm:$0xff]
      %v191 = vld [vmem:[%s1 + $0x8] sm:$0x1]
      %s192 = scalar_lea.vmem %s1, 16
      %v193 = vld [vmem:[%s192] sm:$0xff]
      %v194 = vld [vmem:[%s192 + $0x8] sm:$0x1]
      %s195 = scalar_lea.vmem %s1, 32
      %v196 = vld [vmem:[%s195] sm:$0xff]
      %v197 = vld [vmem:[%s195 + $0x8] sm:$0x1]
      %v199 = vperm.slane %v185, 0
      %v200 = vperm.slane %v185, 1
      %204 = vset.pattern.permute.xlu0 0
      %205 = vperm.xlu0 %204, %v190
      %v206 = vpop.permute.xlu0 %205
      %209 = vset.pattern.permute.xlu0 0
      %210 = vperm.xlu0 %209, %v191
      %v211 = vpop.permute.xlu0 %210
      %v213 = vmul.f32 %v199, %v206
      %v214 = vmul.f32 %v200, %v206
      %v215 = vmul.f32 %v199, %v211
      %v216 = vmul.f32 %v200, %v211
      %v218 = vperm.slane %v183, 0
      %v219 = vperm.slane %v183, 1
      %v222 = vadd.f32 %v218, %v213
      %v223 = vadd.f32 %v219, %v214
      %v224 = vadd.f32 %v218, %v215
      %v225 = vadd.f32 %v219, %v216
      %v227 = vperm.slane %v187, 0
      %v228 = vperm.slane %v187, 1
      %232 = vset.pattern.permute.xlu0 0
      %233 = vperm.xlu0 %232, %v193
      %v234 = vpop.permute.xlu0 %233
      %237 = vset.pattern.permute.xlu0 0
      %238 = vperm.xlu0 %237, %v194
      %v239 = vpop.permute.xlu0 %238
      %v241 = vmul.f32 %v227, %v234
      %v242 = vmul.f32 %v228, %v234
      %v243 = vmul.f32 %v227, %v239
      %v244 = vmul.f32 %v228, %v239
      %v245 = vadd.f32 %v222, %v241
      %v246 = vadd.f32 %v223, %v242
      %v247 = vadd.f32 %v224, %v243
      %v248 = vadd.f32 %v225, %v244
      %v250 = vperm.slane %v189, 0
      %v251 = vperm.slane %v189, 1
      %255 = vset.pattern.permute.xlu0 0
      %256 = vperm.xlu0 %255, %v196
      %v257 = vpop.permute.xlu0 %256
      %260 = vset.pattern.permute.xlu0 0
      %261 = vperm.xlu0 %260, %v197
      %v262 = vpop.permute.xlu0 %261
      %v264 = vmul.f32 %v250, %v257
      %v265 = vmul.f32 %v251, %v257
      %v266 = vmul.f32 %v250, %v262
      %v267 = vmul.f32 %v251, %v262
      %v268 = vadd.f32 %v245, %v264
      %v269 = vadd.f32 %v246, %v265
      %v270 = vadd.f32 %v247, %v266
      %v271 = vadd.f32 %v248, %v267
      %v272 = vmul.f32 %v268, 1.442695
      %v273 = vpow.pop %v272
      %v274 = vmul.f32 %v269, 1.442695
      %v275 = vpow.pop %v274
      %v276 = vmul.f32 %v270, 1.442695
      %v277 = vpow.pop %v276
      %v278 = vmul.f32 %v271, 1.442695
      %v279 = vpow.pop %v278
      %280 = vst [vmem:[%s181] sm:$0xff] %v273
      %281 = vst [vmem:[%s181 + $0x8] sm:$0xff] %v275
      %282 = vst [vmem:[%s181 + $0x10] sm:$0x1] %v277
      %283 = vst [vmem:[%s181 + $0x18] sm:$0x1] %v279
      %s284 = smul.u32 2, %s18
      %p285 = scmp.lt.s32.totalorder %s17, 1
      %s286 = scalar_select %p285, %s17, 1
      %p287 = scmp.lt.s32.totalorder %s284, 1
      %s288 = scalar_select %p287, %s284, 1
      %s289 = smul.addr %s286, 4
      %s290 = sadd.s32 %s288, %s289
      %s291 = smul.addr %s290, 8
      %s292 = scalar_lea.vmem %s2, %s291
      // Predicated region
      $region29: #{tpu_custom_call.1} parent=27 // pred_check
        %p293 = pneg %p94
      $region30: #{tpu_custom_call.1} parent=27 // pred_check_branch
        %295 = sbr.rel (%p293) target = $region32
      $region31: #{tpu_custom_call.1} parent=27 // pred_region
        %s296 = smul.u32 2, %s18
      $region32: #{tpu_custom_call.1} parent=27 // pred_fallthru
        _
    $region28: #{tpu_custom_call.1} parent=5 // pred_fallthru
      _
    %p297 = scmp.le.s32.totalorder 2, %s8
    // Predicated region
    $region33: #{tpu_custom_call.1} parent=5 // pred_check
      %p298 = pneg %p297
    $region34: #{tpu_custom_call.1} parent=5 // pred_check_branch
      %300 = sbr.rel (%p298) target = $region36
    $region35: #{tpu_custom_call.1} parent=5 // pred_region
      %s301 = ssub.s32 %s8, 2
      // Predicated region
      $region37: #{tpu_custom_call.1} parent=35 // pred_check
        %p302 = pneg %p100
      $region38: #{tpu_custom_call.1} parent=35 // pred_check_branch
        %304 = sbr.rel (%p302) target = $region40
      $region39: #{tpu_custom_call.1} parent=35 // pred_region
        %s305 = smul.u32 2, %s20
        %p306 = scmp.lt.s32.totalorder %s19, 1
        %s307 = scalar_select %p306, %s19, 1
        %p308 = scmp.lt.s32.totalorder %s305, 1
        %s309 = scalar_select %p308, %s305, 1
        %s310 = smul.addr %s307, 4
        %s311 = sadd.s32 %s309, %s310
        %s312 = smul.addr %s311, 8
        %s313 = scalar_lea.vmem %s2, %s312
      $region40: #{tpu_custom_call.1} parent=35 // pred_fallthru
        _
    $region36: #{tpu_custom_call.1} parent=5 // pred_fallthru
      _
  $region6: #{tpu_custom_call.1} parent=0 // loop_footer
    %s12 = sadd.s32 1, %s8
  $region7: #{tpu_custom_call.1} parent=0 // loop_footer_branch
    %7 = sbr.rel target = $region3
  $region8: #{tpu_custom_call.1} parent=0 // loop_exit
    _

</llo_original>
